<compile_context>
chip_gen: v5e
topology: v5e:2x2
jax: 0.10.0
libtpu: 0.0.40
codegen_flags: <defaults>
</compile_context>

<pallas_src>
import functools

import jax
import jax.numpy as jnp
from jax import lax
from jax.experimental import pallas as pl
from jax.experimental.pallas import tpu as pltpu

_NEG_LARGE = -1e30  # finite "minus infinity" for masking (avoids inf-inf NaNs)


def _round_up(x, m):
    return ((x + m - 1) // m) * m


def _round_down(x, m):
    return (x // m) * m


def _temporal_attention_kernel(x_ref, w_ref, o_ref, m_sc, l_sc, ctx_sc, *,
                               t_chunk, t_tile, n_chunks, t_valid, needs_mask):
    # x_ref:  (TB, TT, H) block of lstm_output, native dtype
    # w_ref:  (1, H) attention weight row, f32, VMEM-resident across the grid
    # o_ref:  (TB, H) context output block (written only on the last time tile)
    # m_sc/l_sc: (TB, 1) f32 running max / denominator;  ctx_sc: (TB, H) f32 context acc
    ti = pl.program_id(1)

    @pl.when(ti == 0)
    def _init():
        m_sc[...] = jnp.full(m_sc.shape, _NEG_LARGE, dtype=m_sc.dtype)
        l_sc[...] = jnp.zeros(l_sc.shape, dtype=l_sc.dtype)
        ctx_sc[...] = jnp.zeros(ctx_sc.shape, dtype=ctx_sc.dtype)

    w = w_ref[...]  # (1, H) f32, hoisted out of the chunk loop

    def chunk_body(c, carry):
        t0 = pl.multiple_of(c * t_chunk, t_chunk)
        xc = x_ref[:, pl.ds(t0, t_chunk), :]                   # (TB, TC, H) native dtype
        # Linear(H->1) score; bias dropped (softmax shift-invariance). Native-dtype x is
        # promoted to f32 by the f32 weight, so accumulation is f32 (bf16-safe).
        sc = jnp.sum(xc * w, axis=-1)                          # (TB, TC) f32
        if needs_mask:
            t_idx = ti * t_tile + t0 + lax.broadcasted_iota(jnp.int32, (1, t_chunk), 1)
            sc = jnp.where(t_idx < t_valid, sc, _NEG_LARGE)
        m_prev = m_sc[...]                                     # (TB, 1)
        m_new = jnp.maximum(m_prev, jnp.max(sc, axis=-1, keepdims=True))
        alpha = jnp.exp(m_prev - m_new)                        # (TB, 1)  EUP
        p = jnp.exp(sc - m_new)                                # (TB, TC) un-normalized
        l_sc[...] = alpha * l_sc[...] + jnp.sum(p, axis=-1, keepdims=True)
        # ctx[b, :] += sum_t p[b, t] * x[b, t, :]   (f32 accumulation, sublane reduce)
        ctx_sc[...] = alpha * ctx_sc[...] + jnp.sum(p[:, :, None] * xc, axis=1)
        m_sc[...] = m_new
        return carry

    lax.fori_loop(0, n_chunks, chunk_body, 0, unroll=n_chunks <= 8)

    @pl.when(ti == pl.num_programs(1) - 1)
    def _finalize():
        # Single normalization in the epilogue (no divide pass over (TB, T)).
        inv_l = pl.reciprocal(l_sc[...], approx=False)
        o_ref[...] = (ctx_sc[...] * inv_l).astype(o_ref.dtype)


def temporal_attention(lstm_output, weight, bias=None, *,
                       tile_target_bytes=None, chunk_budget_bytes=None):
    """lstm_output: (B, T, H); weight: (1, H) (PyTorch nn.Linear layout); bias: (1,) or None.

    Returns the attention context of shape (B, H).  The bias is accepted for API
    compatibility but not used: softmax is invariant to a per-row constant shift.
    """
    B, T, H = lstm_output.shape
    dtype = lstm_output.dtype
    itemsize = jnp.dtype(dtype).itemsize

    # Sublane multiple per dtype packing (f32: 8, bf16/f16: 16, int8/fp8: 32).
    s_mult = {4: 8, 2: 16, 1: 32}.get(itemsize, 8)

    # Derive tile budgets from the chip generation (v7x: 64 MiB VMEM -> ~4 MiB tiles).
    try:
        vmem_cap = int(pltpu.get_tpu_info().vmem_capacity_bytes)
    except Exception:  # pragma: no cover - conservative fallback
        vmem_cap = 64 * 1024 * 1024
    if tile_target_bytes is None:
        tile_target_bytes = max(1 << 20, min(8 << 20, vmem_cap // 16))
    if chunk_budget_bytes is None:
        chunk_budget_bytes = 2 << 20   # f32 working set per fused inner chunk

    b_rounded = _round_up(B, s_mult)

    # --- batch block (TB) ---
    block_b = min(b_rounded, 512)
    # Keep the minimal (TB, s_mult, H) f32 chunk temp within budget.
    block_b = min(block_b,
                  max(s_mult, _round_down(chunk_budget_bytes // (s_mult * H * 4), s_mult)))
    # Megacore: keep >= 2 batch blocks so the "parallel" axis shards across TensorCores.
    if b_rounded >= 2 * s_mult:
        block_b = min(block_b, max(s_mult, _round_down(b_rounded // 2, s_mult)))
    block_b = max(s_mult, block_b)
    padded_b = _round_up(B, block_b)
    num_b = padded_b // block_b

    # --- inner time chunk (TC): bounds the fused multiply/reduce working set ---
    t_chunk = max(s_mult,
                  min(_round_down(chunk_budget_bytes // (block_b * H * 4), s_mult),
                      _round_up(T, s_mult)))

    # --- grid time tile (TT = n_chunks * TC): targets ~tile_target_bytes of input ---
    chunk_in_bytes = block_b * t_chunk * H * itemsize
    chunks_per_tile = max(1, tile_target_bytes // max(1, chunk_in_bytes))
    chunks_per_tile = min(chunks_per_tile, -(-T // t_chunk))   # ceil(T / t_chunk)
    t_tile = chunks_per_tile * t_chunk
    padded_t = _round_up(T, t_tile)
    num_t = padded_t // t_tile
    needs_mask = padded_t != T

    x = lstm_output
    if padded_b != B or padded_t != T:
        # Padded batch rows produce finite values and are sliced away; padded time steps
        # are masked out of the softmax inside the kernel.
        x = jnp.pad(x, ((0, padded_b - B), (0, padded_t - T), (0, 0)))

    w_row = weight.reshape(1, H).astype(jnp.float32)

    kernel = functools.partial(
        _temporal_attention_kernel,
        t_chunk=t_chunk, t_tile=t_tile, n_chunks=chunks_per_tile,
        t_valid=T, needs_mask=needs_mask)

    # Advisory cost estimate: memory-bound custom call.
    cost = pl.CostEstimate(
        flops=4 * B * T * H,
        transcendentals=B * T,
        bytes_accessed=B * T * H * itemsize + B * H * itemsize + H * 4)

    grid_spec = pltpu.PrefetchScalarGridSpec(
        num_scalar_prefetch=0,
        grid=(num_b, num_t),
        in_specs=[
            pl.BlockSpec((block_b, t_tile, H), lambda bi, ti: (bi, ti, 0)),
            pl.BlockSpec((1, H), lambda bi, ti: (0, 0)),       # weight stays resident
        ],
        out_specs=pl.BlockSpec((block_b, H), lambda bi, ti: (bi, 0)),
        scratch_shapes=[
            pltpu.VMEM((block_b, 1), jnp.float32),   # running max
            pltpu.VMEM((block_b, 1), jnp.float32),   # running denominator
            pltpu.VMEM((block_b, H), jnp.float32),   # f32 context accumulator
        ],
    )

    # VMEM budget: double-buffered input tile + chunk temps + accumulators + headroom.
    in_tile_bytes = block_b * t_tile * H * itemsize
    vmem_need = (2 * in_tile_bytes
                 + 3 * (block_b * t_chunk * H * 4)
                 + 2 * block_b * H * (4 + itemsize)
                 + (2 << 20))
    vmem_limit = int(min(max(32 << 20, vmem_need), int(vmem_cap * 0.9)))

    out = pl.pallas_call(
        kernel,
        out_shape=jax.ShapeDtypeStruct((padded_b, H), dtype),
        grid_spec=grid_spec,
        compiler_params=pltpu.CompilerParams(
            dimension_semantics=("parallel", "arbitrary"),
            vmem_limit_bytes=vmem_limit,
        ),
        cost_estimate=cost,
    )(x, w_row)

    return out[:B]


def temporal_attention_ref(lstm_output, weight, bias):
    """Pure-JAX reference matching the PyTorch forward (weight in (1, H) layout)."""
    scores = jnp.einsum("bth,oh->bto", lstm_output, weight) + bias    # (B, T, 1)
    attn = jax.nn.softmax(scores, axis=1)                             # (B, T, 1)
    ctx = jnp.einsum("bto,bth->boh", attn, lstm_output)               # (B, 1, H)
    return ctx[:, 0, :]                                               # (B, H)


if __name__ == "__main__":
    key = jax.random.PRNGKey(0)
    B, T, H = 2, 8, 32  # batch, seq, hidden_dim

    k_x, k_w, k_b = jax.random.split(key, 3)
    lstm_output = jax.random.normal(k_x, (B, T, H), dtype=jnp.float32)
    # Parameters matching nn.Linear(hidden_dim, 1): weight (1, H), bias (1,).
    weight = jax.random.normal(k_w, (1, H), dtype=jnp.float32) * (1.0 / jnp.sqrt(H))
    bias = jax.random.normal(k_b, (1,), dtype=jnp.float32) * 0.01

    out = jax.block_until_ready(temporal_attention(lstm_output, weight, bias))
    ref = temporal_attention_ref(lstm_output, weight, bias)
    assert out.shape == (B, H)
    assert jnp.allclose(out, ref, atol=1e-5, rtol=1e-5)

    # Padded / masked path (B, T not multiples of the tile sizes).
    x2 = jax.random.normal(jax.random.PRNGKey(1), (5, 13, H), dtype=jnp.float32)
    out2 = jax.block_until_ready(temporal_attention(x2, weight, bias))
    ref2 = temporal_attention_ref(x2, weight, bias)
    assert jnp.allclose(out2, ref2, atol=1e-5, rtol=1e-5)

    # Multi-block grid + cross-tile online softmax (tiny budgets force >1 time tile,
    # multiple batch blocks, unrolled inner chunks and fully-masked trailing chunks).
    x3 = jax.random.normal(jax.random.PRNGKey(2), (20, 48, H), dtype=jnp.float32)
    out3 = jax.block_until_ready(
        temporal_attention(x3, weight, bias,
                           tile_target_bytes=32 * 1024, chunk_budget_bytes=4 * 1024))
    ref3 = temporal_attention_ref(x3, weight, bias)
    assert jnp.allclose(out3, ref3, atol=1e-5, rtol=1e-5)

    print("KERNEL_OK")
</pallas_src>

<mosaic_0001>
module attributes {stable_mosaic.version = 11 : i64} {
  func.func @_temporal_attention_kernel(%arg0: i32, %arg1: i32, %arg2: memref<8x8x32xf32, #tpu.memory_space<vmem>>, %arg3: memref<1x32xf32, #tpu.memory_space<vmem>>, %arg4: memref<8x32xf32, #tpu.memory_space<vmem>>, %arg5: memref<8x1xf32, #tpu.memory_space<vmem>>, %arg6: memref<8x1xf32, #tpu.memory_space<vmem>>, %arg7: memref<8x32xf32, #tpu.memory_space<vmem>>) attributes {dimension_semantics = [#tpu.dimension_semantics<parallel>, #tpu.dimension_semantics<arbitrary>], iteration_bounds = array<i64: 1, 1>, scalar_prefetch = 0 : i64, scratch_operands = 3 : i64, tpu.core_type = #tpu.core_type<tc>, window_params = [{transform_indices = @transform_0, window_bounds = array<i64: 8, 8, 32>}, {pipeline_mode = #tpu.pipeline_mode<synchronous>, transform_indices = @transform_1, window_bounds = array<i64: 1, 32>}, {transform_indices = @transform_2, window_bounds = array<i64: 8, 32>}]} {
    %c0_i32 = arith.constant 0 : i32
    %0 = arith.cmpi eq, %arg1, %c0_i32 : i32
    %1 = arith.extui %0 : i1 to i32
    %c0_i32_0 = arith.constant 0 : i32
    %2 = arith.cmpi ne, %1, %c0_i32_0 : i32
    scf.if %2 {
      %cst_22 = arith.constant -1.000000e+30 : f32
      %40 = vector.broadcast %cst_22 : f32 to vector<8x1xf32>
      %c0_23 = arith.constant 0 : index
      %c0_24 = arith.constant 0 : index
      %41 = vector.load %arg5[%c0_23, %c0_24] : memref<8x1xf32, #tpu.memory_space<vmem>>, vector<8x1xf32>
      tpu.vector_store %arg5[%c0_23, %c0_24], %40 {strides = array<i32>} : memref<8x1xf32, #tpu.memory_space<vmem>>, vector<8x1xf32>,
      %cst_25 = arith.constant 0.000000e+00 : f32
      %42 = vector.broadcast %cst_25 : f32 to vector<8x1xf32>
      %c0_26 = arith.constant 0 : index
      %c0_27 = arith.constant 0 : index
      %43 = vector.load %arg6[%c0_26, %c0_27] : memref<8x1xf32, #tpu.memory_space<vmem>>, vector<8x1xf32>
      tpu.vector_store %arg6[%c0_26, %c0_27], %42 {strides = array<i32>} : memref<8x1xf32, #tpu.memory_space<vmem>>, vector<8x1xf32>,
      %cst_28 = arith.constant 0.000000e+00 : f32
      %44 = vector.broadcast %cst_28 : f32 to vector<8x32xf32>
      %c0_29 = arith.constant 0 : index
      %c0_30 = arith.constant 0 : index
      %45 = vector.load %arg7[%c0_29, %c0_30] : memref<8x32xf32, #tpu.memory_space<vmem>>, vector<8x32xf32>
      tpu.vector_store %arg7[%c0_29, %c0_30], %44 {strides = array<i32>} : memref<8x32xf32, #tpu.memory_space<vmem>>, vector<8x32xf32>,
    } else {
    }
    %c0 = arith.constant 0 : index
    %c0_1 = arith.constant 0 : index
    %3 = vector.load %arg3[%c0, %c0_1] : memref<1x32xf32, #tpu.memory_space<vmem>>, vector<1x32xf32>
    %c0_i32_2 = arith.constant 0 : i32
    %c8_i32 = arith.constant 8 : i32
    %4 = arith.muli %c0_i32_2, %c8_i32 : i32
    %5 = tpu.assume_multiple %4, 8 : i32
    %c0_3 = arith.constant 0 : index
    %6 = arith.index_cast %5 : i32 to index
    %c0_4 = arith.constant 0 : index
    %7 = vector.load %arg2[%c0_3, %6, %c0_4] : memref<8x8x32xf32, #tpu.memory_space<vmem>>, vector<8x8x32xf32>
    %8 = vector.shape_cast %3 : vector<1x32xf32> to vector<1x1x32xf32>
    %9 = vector.broadcast %8 : vector<1x1x32xf32> to vector<8x8x32xf32>
    %10 = arith.mulf %7, %9 : vector<8x8x32xf32>
    %cst = arith.constant dense<0.000000e+00> : vector<8x8xf32>
    %11 = vector.multi_reduction <add>, %10, %cst [2] : vector<8x8x32xf32> to vector<8x8xf32>
    %c0_5 = arith.constant 0 : index
    %c0_6 = arith.constant 0 : index
    %12 = vector.load %arg5[%c0_5, %c0_6] : memref<8x1xf32, #tpu.memory_space<vmem>>, vector<8x1xf32>
    %cst_7 = arith.constant dense<0xFF800000> : vector<8xf32>
    %13 = vector.multi_reduction <maximumf>, %11, %cst_7 [1] : vector<8x8xf32> to vector<8xf32>
    %14 = vector.shape_cast %13 : vector<8xf32> to vector<8x1xf32>
    %15 = arith.maximumf %12, %14 : vector<8x1xf32>
    %16 = arith.subf %12, %15 : vector<8x1xf32>
    %17 = math.exp %16 : vector<8x1xf32>
    %18 = vector.broadcast %15 : vector<8x1xf32> to vector<8x8xf32>
    %19 = arith.subf %11, %18 : vector<8x8xf32>
    %20 = math.exp %19 : vector<8x8xf32>
    %c0_8 = arith.constant 0 : index
    %c0_9 = arith.constant 0 : index
    %21 = vector.load %arg6[%c0_8, %c0_9] : memref<8x1xf32, #tpu.memory_space<vmem>>, vector<8x1xf32>
    %22 = arith.mulf %17, %21 : vector<8x1xf32>
    %cst_10 = arith.constant dense<0.000000e+00> : vector<8xf32>
    %23 = vector.multi_reduction <add>, %20, %cst_10 [1] : vector<8x8xf32> to vector<8xf32>
    %24 = vector.shape_cast %23 : vector<8xf32> to vector<8x1xf32>
    %25 = arith.addf %22, %24 : vector<8x1xf32>
    %c0_11 = arith.constant 0 : index
    %c0_12 = arith.constant 0 : index
    %26 = vector.load %arg6[%c0_11, %c0_12] : memref<8x1xf32, #tpu.memory_space<vmem>>, vector<8x1xf32>
    tpu.vector_store %arg6[%c0_11, %c0_12], %25 {strides = array<i32>} : memref<8x1xf32, #tpu.memory_space<vmem>>, vector<8x1xf32>,
    %c0_13 = arith.constant 0 : index
    %c0_14 = arith.constant 0 : index
    %27 = vector.load %arg7[%c0_13, %c0_14] : memref<8x32xf32, #tpu.memory_space<vmem>>, vector<8x32xf32>
    %28 = vector.broadcast %17 : vector<8x1xf32> to vector<8x32xf32>
    %29 = arith.mulf %28, %27 : vector<8x32xf32>
    %30 = vector.shape_cast %20 : vector<8x8xf32> to vector<8x8x1xf32>
    %31 = vector.broadcast %30 : vector<8x8x1xf32> to vector<8x8x32xf32>
    %32 = arith.mulf %31, %7 : vector<8x8x32xf32>
    %cst_15 = arith.constant dense<0.000000e+00> : vector<8x32xf32>
    %33 = vector.multi_reduction <add>, %32, %cst_15 [1] : vector<8x8x32xf32> to vector<8x32xf32>
    %34 = arith.addf %29, %33 : vector<8x32xf32>
    %c0_16 = arith.constant 0 : index
    %c0_17 = arith.constant 0 : index
    %35 = vector.load %arg7[%c0_16, %c0_17] : memref<8x32xf32, #tpu.memory_space<vmem>>, vector<8x32xf32>
    tpu.vector_store %arg7[%c0_16, %c0_17], %34 {strides = array<i32>} : memref<8x32xf32, #tpu.memory_space<vmem>>, vector<8x32xf32>,
    %c0_18 = arith.constant 0 : index
    %c0_19 = arith.constant 0 : index
    %36 = vector.load %arg5[%c0_18, %c0_19] : memref<8x1xf32, #tpu.memory_space<vmem>>, vector<8x1xf32>
    tpu.vector_store %arg5[%c0_18, %c0_19], %15 {strides = array<i32>} : memref<8x1xf32, #tpu.memory_space<vmem>>, vector<8x1xf32>,
    %c1_i32 = arith.constant 1 : i32
    %c0_i32_20 = arith.constant 0 : i32
    %37 = arith.cmpi eq, %arg1, %c0_i32_20 : i32
    %38 = arith.extui %37 : i1 to i32
    %c0_i32_21 = arith.constant 0 : i32
    %39 = arith.cmpi ne, %38, %c0_i32_21 : i32
    scf.if %39 {
      %c0_22 = arith.constant 0 : index
      %c0_23 = arith.constant 0 : index
      %40 = vector.load %arg6[%c0_22, %c0_23] : memref<8x1xf32, #tpu.memory_space<vmem>>, vector<8x1xf32>
      %41 = tpu.reciprocal %40 : vector<8x1xf32> -> vector<8x1xf32>
      %c0_24 = arith.constant 0 : index
      %c0_25 = arith.constant 0 : index
      %42 = vector.load %arg7[%c0_24, %c0_25] : memref<8x32xf32, #tpu.memory_space<vmem>>, vector<8x32xf32>
      %43 = vector.broadcast %41 : vector<8x1xf32> to vector<8x32xf32>
      %44 = arith.mulf %42, %43 : vector<8x32xf32>
      %c0_26 = arith.constant 0 : index
      %c0_27 = arith.constant 0 : index
      %45 = vector.load %arg4[%c0_26, %c0_27] : memref<8x32xf32, #tpu.memory_space<vmem>>, vector<8x32xf32>
      tpu.vector_store %arg4[%c0_26, %c0_27], %44 {strides = array<i32>} : memref<8x32xf32, #tpu.memory_space<vmem>>, vector<8x32xf32>,
    } else {
    }
    return
  }
  func.func @transform_0(%arg0: i32, %arg1: i32) -> (i32, i32, i32) {
    %c0_i32 = arith.constant 0 : i32
    %c0_i32_0 = arith.constant 0 : i32
    return %arg0, %arg1, %c0_i32 : i32, i32, i32
  }
  func.func @transform_1(%arg0: i32, %arg1: i32) -> (i32, i32) {
    %c0_i32 = arith.constant 0 : i32
    %c0_i32_0 = arith.constant 0 : i32
    %c0_i32_1 = arith.constant 0 : i32
    return %c0_i32, %c0_i32_0 : i32, i32
  }
  func.func @transform_2(%arg0: i32, %arg1: i32) -> (i32, i32) {
    %c0_i32 = arith.constant 0 : i32
    %c0_i32_0 = arith.constant 0 : i32
    return %arg0, %c0_i32 : i32, i32
  }
}

</mosaic_0001>

<llo_original>
// kernel: tpu_custom_call.1
$region0: #{tpu_custom_call.1}
  #allocation0 [shape = 'u32[]', space=smem, size = 0x4, offset = 0x4, fixed_abs, tag = 'smem constant byte address 0x4 - core index']
  #allocation1 [shape = 'u32[72,128]{1,0:T(1,128)}', space=vmem, size = 0x9000, scoped, tag = 'internal scratch']
  #allocation2 [shape = 'f32[8,1]{1,0:T(8,128)}', space=vmem, size = 0x1000, scoped, tag = 'scratch operand']
  #allocation3 [shape = 'f32[8,1]{1,0:T(8,128)}', space=vmem, size = 0x1000, scoped, tag = 'scratch operand']
  #allocation4 [shape = 'f32[8,32]{1,0:T(8,128)}', space=vmem, size = 0x1000, scoped, tag = 'scratch operand']
  %s0 = inlined_call_operand.hbm [shape: f32[8,8,32], index: 0, kind: input, shape index: {}]
  %s1 = inlined_call_operand.hbm [shape: f32[1,32], index: 1, kind: input, shape index: {}]
  %s2 = inlined_call_operand.hbm [shape: f32[8,32], index: 2, kind: output, shape index: {}]
  %s3 = sld [smem:[#allocation0]]
  $region34: #{tpu_custom_call.1} parent=0
    _
  %s5 = ssub.s32 1, %s3
  %s6 = scalar_select 0, %s5, %s3
  $region1: #{tpu_custom_call.1} parent=0
    #allocation5 [shape = 'u8[32768]{0}', space=vmem, size = 0x8000, scoped, tag = 'input window, operand 0, single buffered']
    #allocation6 [shape = 's32[1]{0}', space=sflag, size = 0x4, scoped, tag = 'scoped memory for tpu_custom_call.1']
    #allocation7 [shape = 's32[1]{0}', space=sflag, size = 0x4, scoped, tag = 'scoped memory for tpu_custom_call.1']
    #allocation8 [shape = 'u8[512]{0}', space=vmem, size = 0x400, scoped, tag = 'input window, operand 1, single buffered']
    #allocation9 [shape = 's32[1]{0}', space=sflag, size = 0x4, scoped, tag = 'scoped memory for tpu_custom_call.1']
    #allocation10 [shape = 'u8[4096]{0}', space=vmem, size = 0x1000, scoped, tag = 'output window, operand 0, single buffered']
    %7 = vsyncpa [#allocation6], 0
    %8 = vsyncpa [#allocation9], 0
    %9 = vsyncpa [#allocation7], 0
    // Predicated region
    $region2: #{tpu_custom_call.1} parent=1 // pred_check
      _
    $region3: #{tpu_custom_call.1} parent=1 // pred_check_branch
      %11 = sbr.rel (0) target = $region5
    $region4: #{tpu_custom_call.1} parent=1 // pred_region
      %13 = vsyncadd [#allocation6], 0
      %s14 = sshll.u32 %s0, 4
      %s15 = int_to_ptr.hbm [resolvable:$true] %s14
      %s16 = sshll.u32 [#allocation5], 4
      %s17 = int_to_ptr.vmem [resolvable:$true] %s16
      %22 = dma.hbm_to_vmem [thread:$0]  %s15, 1024, %s17, [#allocation6], 128, 128, 8
    $region5: #{tpu_custom_call.1} parent=1 // pred_fallthru
      _
    // Predicated region
    $region6: #{tpu_custom_call.1} parent=1 // pred_check
      _
    $region7: #{tpu_custom_call.1} parent=1 // pred_check_branch
      %24 = sbr.rel (0) target = $region9
    $region8: #{tpu_custom_call.1} parent=1 // pred_region
      %26 = vsyncadd [#allocation9], 0
      %s28 = sshll.u32 %s1, 4
      %s29 = int_to_ptr.hbm [resolvable:$true] %s28
      %s30 = sshll.u32 [#allocation8], 4
      %s31 = int_to_ptr.vmem [resolvable:$true] %s30
      %33 = dma.hbm_to_vmem [thread:$0]  %s29, 16, %s31, [#allocation9]
    $region9: #{tpu_custom_call.1} parent=1 // pred_fallthru
      _
    // Predicated region
    $region10: #{tpu_custom_call.1} parent=1 // pred_check
      _
    $region11: #{tpu_custom_call.1} parent=1 // pred_check_branch
      %35 = sbr.rel (0) target = $region13
    $region12: #{tpu_custom_call.1} parent=1 // pred_region
      %37 = dma.done [#allocation6], 1024
    $region13: #{tpu_custom_call.1} parent=1 // pred_fallthru
      _
    // Predicated region
    $region14: #{tpu_custom_call.1} parent=1 // pred_check
      _
    $region15: #{tpu_custom_call.1} parent=1 // pred_check_branch
      %39 = sbr.rel (0) target = $region17
    $region16: #{tpu_custom_call.1} parent=1 // pred_region
      %41 = dma.done [#allocation9], 16
    $region17: #{tpu_custom_call.1} parent=1 // pred_fallthru
      _
    %p42 = scmp.eq.s32.totalorder 0, 0
    // Predicated region
    $region18: #{tpu_custom_call.1} parent=1 // pred_check
      %p43 = pneg %p42
    $region19: #{tpu_custom_call.1} parent=1 // pred_check_branch
      %45 = sbr.rel (%p43) target = $region21
    $region20: #{tpu_custom_call.1} parent=1 // pred_region
      %vm46 = vcmask 7168
      %47 = vst.msk [vmem:[#allocation2] sm:$0xff] %vm46, -1e+30
      %48 = vst.msk [vmem:[#allocation3] sm:$0xff] %vm46, 0.0
      %vm49 = vcmask 261120
      %50 = vst.msk [vmem:[#allocation4] sm:$0xff] %vm49, 0.0
    $region21: #{tpu_custom_call.1} parent=1 // pred_fallthru
      _
    %v51 = vld [vmem:[#allocation8] sm:$0x1]
    %v52 = vld [vmem:[#allocation5] sm:$0xff]
    %v53 = vld [vmem:[#allocation5 + $0x8] sm:$0xff]
    %v54 = vld [vmem:[#allocation5 + $0x10] sm:$0xff]
    %v55 = vld [vmem:[#allocation5 + $0x18] sm:$0xff]
    %v56 = vld [vmem:[#allocation5 + $0x20] sm:$0xff]
    %v57 = vld [vmem:[#allocation5 + $0x28] sm:$0xff]
    %v58 = vld [vmem:[#allocation5 + $0x30] sm:$0xff]
    %v59 = vld [vmem:[#allocation5 + $0x38] sm:$0xff]
    %v61 = vperm.slane %v51, 0
    %v63 = vmul.f32 %v52, %v61
    %v64 = vmul.f32 %v53, %v61
    %v65 = vmul.f32 %v54, %v61
    %v66 = vmul.f32 %v55, %v61
    %v67 = vmul.f32 %v56, %v61
    %v68 = vmul.f32 %v57, %v61
    %v69 = vmul.f32 %v58, %v61
    %v70 = vmul.f32 %v59, %v61
    %vm71 = vcmask 261120
    %v72 = vsel %vm71, %v63, 0.0
    %73 = vadd.xlane.f32.xlu0 %v72
    %v74 = vpop.xlane.xlu0 %73
    %v75 = vsel %vm71, %v64, 0.0
    %76 = vadd.xlane.f32.xlu0 %v75
    %v77 = vpop.xlane.xlu0 %76
    %v78 = vsel %vm71, %v65, 0.0
    %79 = vadd.xlane.f32.xlu0 %v78
    %v80 = vpop.xlane.xlu0 %79
    %v81 = vsel %vm71, %v66, 0.0
    %82 = vadd.xlane.f32.xlu0 %v81
    %v83 = vpop.xlane.xlu0 %82
    %v84 = vsel %vm71, %v67, 0.0
    %85 = vadd.xlane.f32.xlu0 %v84
    %v86 = vpop.xlane.xlu0 %85
    %v87 = vsel %vm71, %v68, 0.0
    %88 = vadd.xlane.f32.xlu0 %v87
    %v89 = vpop.xlane.xlu0 %88
    %v90 = vsel %vm71, %v69, 0.0
    %91 = vadd.xlane.f32.xlu0 %v90
    %v92 = vpop.xlane.xlu0 %91
    %v93 = vsel %vm71, %v70, 0.0
    %94 = vadd.xlane.f32.xlu0 %v93
    %v95 = vpop.xlane.xlu0 %94
    %v96 = vld [vmem:[#allocation2] sm:$0xff]
    %v105 = vlaneseq
    %v106 = vand.u32 %v105, 127
    %v107 = vperm.slane %v74, %v106
    %v108 = vperm.slane %v77, %v106
    %v109 = vperm.slane %v80, %v106
    %v110 = vperm.slane %v83, %v106
    %v111 = vperm.slane %v86, %v106
    %v112 = vperm.slane %v89, %v106
    %v113 = vperm.slane %v92, %v106
    %v114 = vperm.slane %v95, %v106
    %vm115 = vcmask 1041409
    %v116 = vsel %vm115, %v108, %v107
    %vm117 = vcmask 1042434
    %v118 = vsel %vm117, %v109, %v116
    %vm119 = vcmask 1043459
    %v120 = vsel %vm119, %v110, %v118
    %vm121 = vcmask 1044484
    %v122 = vsel %vm121, %v111, %v120
    %vm123 = vcmask 1045509
    %v124 = vsel %vm123, %v112, %v122
    %vm125 = vcmask 1046534
    %v126 = vsel %vm125, %v113, %v124
    %vm127 = vcmask 1047559
    %v128 = vsel %vm127, %v114, %v126
    %vm130 = vcmask 64512
    %v131 = vsel %vm130, %v128, -inf
    %132 = vmax.xlane.f32.xlu0 %v131
    %v133 = vpop.xlane.xlu0 %132
    %v134 = vmax.f32 %v96, %v133
    %v135 = vsub.f32 %v96, %v134
    %v136 = vmul.f32 %v135, 1.442695
    %v137 = vpow.pop %v136
    %139 = vset.pattern.permute.xlu0 0
    %140 = vperm.xlu0 %139, %v134
    %v141 = vpop.permute.xlu0 %140
    %v142 = vperm.slane %v141, 0
    %v143 = vperm.slane %v141, 1
    %v144 = vperm.slane %v141, 2
    %v145 = vperm.slane %v141, 3
    %v146 = vperm.slane %v141, 4
    %v147 = vperm.slane %v141, 5
    %v148 = vperm.slane %v141, 6
    %v149 = vperm.slane %v141, 7
    %v158 = vsub.f32 %v74, %v142
    %v159 = vsub.f32 %v77, %v143
    %v160 = vsub.f32 %v80, %v144
    %v161 = vsub.f32 %v83, %v145
    %v162 = vsub.f32 %v86, %v146
    %v163 = vsub.f32 %v89, %v147
    %v164 = vsub.f32 %v92, %v148
    %v165 = vsub.f32 %v95, %v149
    %v166 = vmul.f32 %v158, 1.442695
    %v167 = vpow.pop %v166
    %v168 = vmul.f32 %v159, 1.442695
    %v169 = vpow.pop %v168
    %v170 = vmul.f32 %v160, 1.442695
    %v171 = vpow.pop %v170
    %v172 = vmul.f32 %v161, 1.442695
    %v173 = vpow.pop %v172
    %v174 = vmul.f32 %v162, 1.442695
    %v175 = vpow.pop %v174
    %v176 = vmul.f32 %v163, 1.442695
    %v177 = vpow.pop %v176
    %v178 = vmul.f32 %v164, 1.442695
    %v179 = vpow.pop %v178
    %v180 = vmul.f32 %v165, 1.442695
    %v181 = vpow.pop %v180
    %v182 = vld [vmem:[#allocation3] sm:$0xff]
    %v183 = vmul.f32 %v137, %v182
    %192 = vset.pattern.permute.xlu0 0
    %193 = vperm.xlu0 %192, %v167
    %v194 = vpop.permute.xlu0 %193
    %195 = vset.pattern.permute.xlu0 0
    %196 = vperm.xlu0 %195, %v169
    %v197 = vpop.permute.xlu0 %196
    %198 = vset.pattern.permute.xlu0 0
    %199 = vperm.xlu0 %198, %v171
    %v200 = vpop.permute.xlu0 %199
    %201 = vset.pattern.permute.xlu0 0
    %202 = vperm.xlu0 %201, %v173
    %v203 = vpop.permute.xlu0 %202
    %204 = vset.pattern.permute.xlu0 0
    %205 = vperm.xlu0 %204, %v175
    %v206 = vpop.permute.xlu0 %205
    %207 = vset.pattern.permute.xlu0 0
    %208 = vperm.xlu0 %207, %v177
    %v209 = vpop.permute.xlu0 %208
    %210 = vset.pattern.permute.xlu0 0
    %211 = vperm.xlu0 %210, %v179
    %v212 = vpop.permute.xlu0 %211
    %213 = vset.pattern.permute.xlu0 0
    %214 = vperm.xlu0 %213, %v181
    %v215 = vpop.permute.xlu0 %214
    %v216 = vperm.slane %v194, %v106
    %v217 = vperm.slane %v197, %v106
    %v218 = vperm.slane %v200, %v106
    %v219 = vperm.slane %v203, %v106
    %v220 = vperm.slane %v206, %v106
    %v221 = vperm.slane %v209, %v106
    %v222 = vperm.slane %v212, %v106
    %v223 = vperm.slane %v215, %v106
    %v224 = vsel %vm115, %v217, %v216
    %v225 = vsel %vm117, %v218, %v224
    %v226 = vsel %vm119, %v219, %v225
    %v227 = vsel %vm121, %v220, %v226
    %v228 = vsel %vm123, %v221, %v227
    %v229 = vsel %vm125, %v222, %v228
    %v230 = vsel %vm127, %v223, %v229
    %v232 = vsel %vm130, %v230, 0.0
    %233 = vadd.xlane.f32.xlu0 %v232
    %v234 = vpop.xlane.xlu0 %233
    %v235 = vadd.f32 %v183, %v234
    %vm236 = vcmask 7168
    %237 = vst.msk [vmem:[#allocation3] sm:$0xff] %vm236, %v235
    %v238 = vld [vmem:[#allocation4] sm:$0xff]
    %240 = vset.pattern.permute.xlu0 0
    %241 = vperm.xlu0 %240, %v137
    %v242 = vpop.permute.xlu0 %241
    %v244 = vmul.f32 %v242, %v238
    %v253 = vmul.f32 %v194, %v52
    %v254 = vmul.f32 %v197, %v53
    %v255 = vmul.f32 %v200, %v54
    %v256 = vmul.f32 %v203, %v55
    %v257 = vmul.f32 %v206, %v56
    %v258 = vmul.f32 %v209, %v57
    %v259 = vmul.f32 %v212, %v58
    %v260 = vmul.f32 %v215, %v59
    %v261 = vsel %vm71, %v253, 0.0
    %v262 = vrot.slane %v261, 4
    %v263 = vadd.f32 %v261, %v262
    %v264 = vrot.slane %v263, 2
    %v265 = vadd.f32 %v263, %v264
    %v266 = vrot.slane %v265, 1
    %v267 = vadd.f32 %v265, %v266
    %v268 = vsel %vm71, %v254, 0.0
    %v269 = vrot.slane %v268, 4
    %v270 = vadd.f32 %v268, %v269
    %v271 = vrot.slane %v270, 2
    %v272 = vadd.f32 %v270, %v271
    %v273 = vrot.slane %v272, 1
    %v274 = vadd.f32 %v272, %v273
    %v275 = vsel %vm71, %v255, 0.0
    %v276 = vrot.slane %v275, 4
    %v277 = vadd.f32 %v275, %v276
    %v278 = vrot.slane %v277, 2
    %v279 = vadd.f32 %v277, %v278
    %v280 = vrot.slane %v279, 1
    %v281 = vadd.f32 %v279, %v280
    %v282 = vsel %vm71, %v256, 0.0
    %v283 = vrot.slane %v282, 4
    %v284 = vadd.f32 %v282, %v283
    %v285 = vrot.slane %v284, 2
    %v286 = vadd.f32 %v284, %v285
    %v287 = vrot.slane %v286, 1
    %v288 = vadd.f32 %v286, %v287
    %v289 = vsel %vm71, %v257, 0.0
    %v290 = vrot.slane %v289, 4
    %v291 = vadd.f32 %v289, %v290
    %v292 = vrot.slane %v291, 2
    %v293 = vadd.f32 %v291, %v292
    %v294 = vrot.slane %v293, 1
    %v295 = vadd.f32 %v293, %v294
    %v296 = vsel %vm71, %v258, 0.0
    %v297 = vrot.slane %v296, 4
    %v298 = vadd.f32 %v296, %v297
    %v299 = vrot.slane %v298, 2
    %v300 = vadd.f32 %v298, %v299
    %v301 = vrot.slane %v300, 1
    %v302 = vadd.f32 %v300, %v301
    %v303 = vsel %vm71, %v259, 0.0
    %v304 = vrot.slane %v303, 4
    %v305 = vadd.f32 %v303, %v304
    %v306 = vrot.slane %v305, 2
    %v307 = vadd.f32 %v305, %v306
    %v308 = vrot.slane %v307, 1
    %v309 = vadd.f32 %v307, %v308
    %v310 = vsel %vm71, %v260, 0.0
    %v311 = vrot.slane %v310, 4
    %v312 = vadd.f32 %v310, %v311
    %v313 = vrot.slane %v312, 2
    %v314 = vadd.f32 %v312, %v313
    %v315 = vrot.slane %v314, 1
    %v316 = vadd.f32 %v314, %v315
    %v325 = vsel %vm115, %v274, %v267
    %v326 = vsel %vm117, %v281, %v325
    %v327 = vsel %vm119, %v288, %v326
    %v328 = vsel %vm121, %v295, %v327
    %v329 = vsel %vm123, %v302, %v328
    %v330 = vsel %vm125, %v309, %v329
    %v331 = vsel %vm127, %v316, %v330
    %v333 = vadd.f32 %v244, %v331
    %334 = vst.msk [vmem:[#allocation4] sm:$0xff] %vm71, %v333
    %335 = vst.msk [vmem:[#allocation2] sm:$0xff] %vm236, %v134
    // Predicated region
    $region22: #{tpu_custom_call.1} parent=1 // pred_check
      %p336 = pneg %p42
    $region23: #{tpu_custom_call.1} parent=1 // pred_check_branch
      %338 = sbr.rel (%p336) target = $region25
    $region24: #{tpu_custom_call.1} parent=1 // pred_region
      %v339 = vld [vmem:[#allocation3] sm:$0xff]
      %v340 = vrcp.pop %v339
      %v341 = vmul.f32 %v339, %v340
      %v342 = vsub.f32 1.0, %v341
      %v343 = vmul.f32 %v340, %v342
      %v344 = vadd.f32 %v340, %v343
      %vm345 = vweird.f32 %v339
      %vm346 = vweird.f32 %v340
      %vm347 = vmor %vm345, %vm346
      %v348 = vsel %vm347, %v340, %v344
      %v349 = vand.u32 2147483647, %v339
      %vm350 = vcmp.eq.f32.partialorder %v349, 8.507059e+37
      %v351 = vand.u32 %v339, 2147483648
      %v352 = vor.u32 1.1754944e-38, %v351
      %v353 = vsel %vm350, %v352, %v348
      %v354 = vld [vmem:[#allocation4] sm:$0xff]
      %356 = vset.pattern.permute.xlu0 0
      %357 = vperm.xlu0 %356, %v353
      %v358 = vpop.permute.xlu0 %357
      %v360 = vmul.f32 %v354, %v358
      %361 = vst.msk [vmem:[#allocation10] sm:$0xff] %vm71, %v360
    $region25: #{tpu_custom_call.1} parent=1 // pred_fallthru
      _
    // Predicated region
    $region26: #{tpu_custom_call.1} parent=1 // pred_check
      _
    $region27: #{tpu_custom_call.1} parent=1 // pred_check_branch
      %363 = sbr.rel (0) target = $region29
    $region28: #{tpu_custom_call.1} parent=1 // pred_region
      %365 = vsyncadd [#allocation7], 0
      %s367 = sshll.u32 [#allocation10], 4
      %s368 = int_to_ptr.vmem [resolvable:$true] %s367
      %s369 = sshll.u32 %s2, 4
      %s370 = int_to_ptr.hbm [resolvable:$true] %s369
      %372 = dma.vmem_to_hbm [thread:$0]  %s368, 128, %s370, [#allocation7]
    $region29: #{tpu_custom_call.1} parent=1 // pred_fallthru
      _
    // Predicated region
    $region30: #{tpu_custom_call.1} parent=1 // pred_check
      _
    $region31: #{tpu_custom_call.1} parent=1 // pred_check_branch
      %374 = sbr.rel (0) target = $region33
    $region32: #{tpu_custom_call.1} parent=1 // pred_region
      %376 = dma.done [#allocation7], 128
    $region33: #{tpu_custom_call.1} parent=1 // pred_fallthru
      _
    %377 = vsyncpa [#allocation6], 1
    %378 = vsyncpa [#allocation9], 1
    %379 = vsyncpa [#allocation7], 1

</llo_original>
